<compile_context>
chip_gen: v5e
topology: v5e:2x2
jax: 0.10.0
libtpu: 0.0.40
codegen_flags: <defaults>
</compile_context>

<pallas_src>
import math

import jax
import jax.numpy as jnp
from jax.experimental import pallas as pl
from jax.experimental.pallas import tpu as pltpu


def _round_up(x, m):
    return (x + m - 1) // m * m


def mlp_kernel(x_ref, w1_ref, b1_ref, w2_ref, b2_ref, o_ref):
    # x_ref : (TM, D)   w1_ref: (H, D)   b1_ref: (1, H)
    # w2_ref: (D, H)    b2_ref: (1, D)   o_ref : (TM, D)
    x = x_ref[...]

    # c_fc: contract x's last dim with W1's last dim (PyTorch (out, in) layout,
    # no wrapper-side transpose); f32 accumulation on the MXU.
    h = jax.lax.dot_general(
        x, w1_ref[...],
        dimension_numbers=(((1,), (1,)), ((), ())),
        preferred_element_type=jnp.float32,
    )
    h = h + b1_ref[...]

    # exact erf-GELU in f32 (matches torch.nn.GELU() default)
    h = 0.5 * h * (1.0 + jax.lax.erf(h * (1.0 / math.sqrt(2.0))))

    # c_proj: (TM, H) x (D, H), contracting the H dims; f32 accumulation.
    y = jax.lax.dot_general(
        h.astype(w2_ref.dtype), w2_ref[...],
        dimension_numbers=(((1,), (1,)), ((), ())),
        preferred_element_type=jnp.float32,
    )
    y = y + b2_ref[...]

    # dropout: identity (eval mode)
    o_ref[...] = y.astype(o_ref.dtype)


def _const_spec(shape):
    """BlockSpec for a grid-invariant (weight / bias) operand.

    Single-buffered (pl.Buffered(1)) when supported: these blocks never change
    across the grid, so double-buffering them is pure VMEM waste.
    """
    index_map = lambda i: (0,) * len(shape)
    if hasattr(pl, "Buffered"):
        try:
            return pl.BlockSpec(shape, index_map, pipeline_mode=pl.Buffered(1))
        except TypeError:
            pass
    return pl.BlockSpec(shape, index_map)


def mlp_pallas(x, w1, b1, w2, b2, *, tile_m=256, compute_dtype=None):
    """Fused MLP forward.

    x : [B, T, D] ; w1: [H, D], b1: [H] ; w2: [D, H], b2: [D]
    (PyTorch Linear layout: weight is (out_features, in_features), H = 4*D).

    compute_dtype: None -> matmuls in x.dtype; jnp.bfloat16 -> bf16-MXU path
    (v6e / v7x); accumulation, biases and GELU stay f32 in either case.
    """
    B, T, D = x.shape
    H = w1.shape[0]
    M = B * T
    out_dtype = x.dtype

    if compute_dtype is not None:
        x = x.astype(compute_dtype)
        w1 = w1.astype(compute_dtype)
        w2 = w2.astype(compute_dtype)
    b1r = b1.astype(jnp.float32).reshape(1, H)
    b2r = b2.astype(jnp.float32).reshape(1, D)

    x2d = x.reshape(M, D)

    # Large, 8-aligned row tiles; pad ragged M so every grid step is full.
    tm = max(8, _round_up(min(tile_m, M), 8))
    Mp = _round_up(M, tm)
    if Mp != M:
        x2d = jnp.pad(x2d, ((0, Mp - M), (0, 0)))
    grid = (Mp // tm,)

    # VMEM budget: single-buffered weights/biases + double-buffered x/out tiles
    # + f32 (tm, H) intermediate; 2x headroom, capped under v7x's 64 MiB VMEM.
    in_bpe = jnp.dtype(x2d.dtype).itemsize
    out_bpe = jnp.dtype(out_dtype).itemsize
    need = (
        (H * D + D * H) * in_bpe      # weights (single-buffered)
        + (H + D) * 4                 # biases (f32)
        + 2 * tm * D * in_bpe         # x tile, double-buffered
        + 2 * tm * D * out_bpe        # out tile, double-buffered
        + tm * H * 4                  # f32 intermediate
    )
    vmem_limit = int(min(max(2 * need, 32 * 1024 * 1024), 60 * 1024 * 1024))

    cost = pl.CostEstimate(
        flops=2 * Mp * H * D * 2,     # two matmuls
        transcendentals=Mp * H,       # erf
        bytes_accessed=(
            Mp * D * in_bpe + Mp * D * out_bpe
            + (H * D + D * H) * in_bpe + (H + D) * 4
        ),
    )

    out2d = pl.pallas_call(
        mlp_kernel,
        out_shape=jax.ShapeDtypeStruct((Mp, D), out_dtype),
        grid_spec=pltpu.PrefetchScalarGridSpec(
            num_scalar_prefetch=0,
            grid=grid,
            in_specs=[
                pl.BlockSpec((tm, D), lambda i: (i, 0)),   # x tile
                _const_spec((H, D)),                       # W1 (PyTorch layout)
                _const_spec((1, H)),                       # b1
                _const_spec((D, H)),                       # W2 (PyTorch layout)
                _const_spec((1, D)),                       # b2
            ],
            out_specs=pl.BlockSpec((tm, D), lambda i: (i, 0)),
        ),
        compiler_params=pltpu.CompilerParams(
            dimension_semantics=("parallel",),
            vmem_limit_bytes=vmem_limit,
        ),
        cost_estimate=cost,
    )(x2d, w1, b1r, w2, b2r)

    return out2d[:M].reshape(B, T, D)


def mlp_reference(x, w1, b1, w2, b2):
    """Pure-JAX reference matching the PyTorch forward (eval mode)."""
    h = jnp.einsum("btd,hd->bth", x, w1) + b1
    h = 0.5 * h * (1.0 + jax.lax.erf(h / jnp.sqrt(2.0)))
    y = jnp.einsum("bth,dh->btd", h, w2) + b2
    return y


if __name__ == "__main__":
    # config: n_embd=32, bias=True, dropout=0.0 (eval-mode identity)
    B, T, D = 2, 8, 32
    H = 4 * D

    key = jax.random.PRNGKey(0)
    kx, kw1, kb1, kw2, kb2 = jax.random.split(key, 5)

    x = jax.random.normal(kx, (B, T, D), dtype=jnp.float32)
    # deterministic init, PyTorch Linear layout (out_features, in_features)
    w1 = jax.random.normal(kw1, (H, D), dtype=jnp.float32) * 0.02
    b1 = jax.random.normal(kb1, (H,), dtype=jnp.float32) * 0.02
    w2 = jax.random.normal(kw2, (D, H), dtype=jnp.float32) * 0.02
    b2 = jax.random.normal(kb2, (D,), dtype=jnp.float32) * 0.02

    ref = mlp_reference(x, w1, b1, w2, b2)

    # f32 path: matches torch.nn.GELU() / Linear semantics up to f32 accumulation.
    out = jax.block_until_ready(mlp_pallas(x, w1, b1, w2, b2))
    assert out.shape == (B, T, D)
    assert jnp.allclose(out, ref, atol=1e-5, rtol=1e-5), "f32 mismatch vs reference"

    # bf16-MXU path (v6e / v7x): bf16 matmul inputs, f32 accumulation + GELU.
    out_bf16 = jax.block_until_ready(
        mlp_pallas(x, w1, b1, w2, b2, compute_dtype=jnp.bfloat16)
    )
    assert out_bf16.shape == (B, T, D)
    assert jnp.allclose(out_bf16, ref, atol=5e-3, rtol=5e-2), "bf16 mismatch vs reference"

    print("KERNEL_OK")
</pallas_src>

<mosaic_0001>
module attributes {stable_mosaic.version = 11 : i64} {
  func.func @mlp_kernel(%arg0: i32, %arg1: memref<16x32xf32, #tpu.memory_space<vmem>>, %arg2: memref<128x32xf32, #tpu.memory_space<vmem>>, %arg3: memref<1x128xf32, #tpu.memory_space<vmem>>, %arg4: memref<32x128xf32, #tpu.memory_space<vmem>>, %arg5: memref<1x32xf32, #tpu.memory_space<vmem>>, %arg6: memref<16x32xf32, #tpu.memory_space<vmem>>) attributes {dimension_semantics = [#tpu.dimension_semantics<parallel>], iteration_bounds = array<i64: 1>, scalar_prefetch = 0 : i64, scratch_operands = 0 : i64, tpu.core_type = #tpu.core_type<tc>, window_params = [{transform_indices = @transform_0, window_bounds = array<i64: 16, 32>}, {pipeline_mode = #tpu.pipeline_mode<synchronous>, transform_indices = @transform_1, window_bounds = array<i64: 128, 32>}, {pipeline_mode = #tpu.pipeline_mode<synchronous>, transform_indices = @transform_2, window_bounds = array<i64: 1, 128>}, {pipeline_mode = #tpu.pipeline_mode<synchronous>, transform_indices = @transform_3, window_bounds = array<i64: 32, 128>}, {pipeline_mode = #tpu.pipeline_mode<synchronous>, transform_indices = @transform_4, window_bounds = array<i64: 1, 32>}, {transform_indices = @transform_5, window_bounds = array<i64: 16, 32>}]} {
    %c0 = arith.constant 0 : index
    %c0_0 = arith.constant 0 : index
    %0 = vector.load %arg1[%c0, %c0_0] : memref<16x32xf32, #tpu.memory_space<vmem>>, vector<16x32xf32>
    %c0_1 = arith.constant 0 : index
    %c0_2 = arith.constant 0 : index
    %1 = vector.load %arg2[%c0_1, %c0_2] : memref<128x32xf32, #tpu.memory_space<vmem>>, vector<128x32xf32>
    %cst = arith.constant dense<0.000000e+00> : vector<16x128xf32>
    %2 = tpu.matmul %0, %1, %cst {dimension_numbers = #tpu.dot_dimension_numbers<[1], [1], [0], [0], [0, 0, 1, 0], [], []>} : vector<16x32xf32>, vector<128x32xf32>, vector<16x128xf32> -> vector<16x128xf32>
    %c0_3 = arith.constant 0 : index
    %c0_4 = arith.constant 0 : index
    %3 = vector.load %arg3[%c0_3, %c0_4] : memref<1x128xf32, #tpu.memory_space<vmem>>, vector<1x128xf32>
    %4 = vector.broadcast %3 : vector<1x128xf32> to vector<16x128xf32>
    %5 = arith.addf %2, %4 : vector<16x128xf32>
    %cst_5 = arith.constant 5.000000e-01 : f32
    %6 = vector.broadcast %cst_5 : f32 to vector<16x128xf32>
    %7 = arith.mulf %6, %5 : vector<16x128xf32>
    %cst_6 = arith.constant 0.707106769 : f32
    %8 = vector.broadcast %cst_6 : f32 to vector<16x128xf32>
    %9 = arith.mulf %5, %8 : vector<16x128xf32>
    %10 = math.erf %9 : vector<16x128xf32>
    %cst_7 = arith.constant 1.000000e+00 : f32
    %11 = vector.broadcast %cst_7 : f32 to vector<16x128xf32>
    %12 = arith.addf %11, %10 : vector<16x128xf32>
    %13 = arith.mulf %7, %12 : vector<16x128xf32>
    %c0_8 = arith.constant 0 : index
    %c0_9 = arith.constant 0 : index
    %14 = vector.load %arg4[%c0_8, %c0_9] : memref<32x128xf32, #tpu.memory_space<vmem>>, vector<32x128xf32>
    %cst_10 = arith.constant dense<0.000000e+00> : vector<16x32xf32>
    %15 = tpu.matmul %13, %14, %cst_10 {dimension_numbers = #tpu.dot_dimension_numbers<[1], [1], [0], [0], [0, 0, 1, 0], [], []>} : vector<16x128xf32>, vector<32x128xf32>, vector<16x32xf32> -> vector<16x32xf32>
    %c0_11 = arith.constant 0 : index
    %c0_12 = arith.constant 0 : index
    %16 = vector.load %arg5[%c0_11, %c0_12] : memref<1x32xf32, #tpu.memory_space<vmem>>, vector<1x32xf32>
    %17 = vector.broadcast %16 : vector<1x32xf32> to vector<16x32xf32>
    %18 = arith.addf %15, %17 : vector<16x32xf32>
    %c0_13 = arith.constant 0 : index
    %c0_14 = arith.constant 0 : index
    %19 = vector.load %arg6[%c0_13, %c0_14] : memref<16x32xf32, #tpu.memory_space<vmem>>, vector<16x32xf32>
    tpu.vector_store %arg6[%c0_13, %c0_14], %18 {strides = array<i32>} : memref<16x32xf32, #tpu.memory_space<vmem>>, vector<16x32xf32>,
    return
  }
  func.func @transform_0(%arg0: i32) -> (i32, i32) {
    %c0_i32 = arith.constant 0 : i32
    %c0_i32_0 = arith.constant 0 : i32
    return %arg0, %c0_i32 : i32, i32
  }
  func.func @transform_1(%arg0: i32) -> (i32, i32) {
    %c0_i32 = arith.constant 0 : i32
    %c0_i32_0 = arith.constant 0 : i32
    %c0_i32_1 = arith.constant 0 : i32
    return %c0_i32, %c0_i32_0 : i32, i32
  }
  func.func @transform_2(%arg0: i32) -> (i32, i32) {
    %c0_i32 = arith.constant 0 : i32
    %c0_i32_0 = arith.constant 0 : i32
    %c0_i32_1 = arith.constant 0 : i32
    return %c0_i32, %c0_i32_0 : i32, i32
  }
  func.func @transform_3(%arg0: i32) -> (i32, i32) {
    %c0_i32 = arith.constant 0 : i32
    %c0_i32_0 = arith.constant 0 : i32
    %c0_i32_1 = arith.constant 0 : i32
    return %c0_i32, %c0_i32_0 : i32, i32
  }
  func.func @transform_4(%arg0: i32) -> (i32, i32) {
    %c0_i32 = arith.constant 0 : i32
    %c0_i32_0 = arith.constant 0 : i32
    %c0_i32_1 = arith.constant 0 : i32
    return %c0_i32, %c0_i32_0 : i32, i32
  }
  func.func @transform_5(%arg0: i32) -> (i32, i32) {
    %c0_i32 = arith.constant 0 : i32
    %c0_i32_0 = arith.constant 0 : i32
    return %arg0, %c0_i32 : i32, i32
  }
}

</mosaic_0001>

<llo_original>
// kernel: tpu_custom_call.1
$region0: #{tpu_custom_call.1}
  #allocation0 [shape = 'u32[]', space=smem, size = 0x4, offset = 0x4, fixed_abs, tag = 'smem constant byte address 0x4 - core index']
  #allocation1 [shape = 'u32[72,128]{1,0:T(1,128)}', space=vmem, size = 0x9000, scoped, tag = 'internal scratch']
  %s0 = inlined_call_operand.vmem [shape: f32[16,32], index: 0, kind: input, shape index: {}]
  %s1 = inlined_call_operand.vmem [shape: f32[128,32], index: 1, kind: input, shape index: {}]
  %s2 = inlined_call_operand.vmem [shape: f32[1,128], index: 2, kind: input, shape index: {}]
  %s3 = inlined_call_operand.vmem [shape: f32[32,128], index: 3, kind: input, shape index: {}]
  %s4 = inlined_call_operand.vmem [shape: f32[1,32], index: 4, kind: input, shape index: {}]
  %s5 = inlined_call_operand.hbm [shape: f32[16,32], index: 5, kind: output, shape index: {}]
  %s6 = sld [smem:[#allocation0]]
  $region30: #{tpu_custom_call.1} parent=0
    _
  %s8 = ssub.s32 1, %s6
  %s9 = scalar_select 0, %s8, %s6
  $region1: #{tpu_custom_call.1} parent=0
    #allocation2 [shape = 'u8[8192]{0}', space=vmem, size = 0x2000, scoped, tag = 'output window, operand 0, single buffered']
    #allocation3 [shape = 's32[1]{0}', space=sflag, size = 0x4, scoped, tag = 'scoped memory for tpu_custom_call.1']
    %10 = vsyncpa [#allocation3], 0
    // Predicated region
    $region2: #{tpu_custom_call.1} parent=1 // pred_check
      _
    $region3: #{tpu_custom_call.1} parent=1 // pred_check_branch
      %12 = sbr.rel (0) target = $region5
    $region4: #{tpu_custom_call.1} parent=1 // pred_region
      _
    $region5: #{tpu_custom_call.1} parent=1 // pred_fallthru
      _
    // Predicated region
    $region6: #{tpu_custom_call.1} parent=1 // pred_check
      _
    $region7: #{tpu_custom_call.1} parent=1 // pred_check_branch
      %14 = sbr.rel (0) target = $region9
    $region8: #{tpu_custom_call.1} parent=1 // pred_region
      _
    $region9: #{tpu_custom_call.1} parent=1 // pred_fallthru
      _
    // Predicated region
    $region10: #{tpu_custom_call.1} parent=1 // pred_check
      _
    $region11: #{tpu_custom_call.1} parent=1 // pred_check_branch
      %16 = sbr.rel (0) target = $region13
    $region12: #{tpu_custom_call.1} parent=1 // pred_region
      _
    $region13: #{tpu_custom_call.1} parent=1 // pred_fallthru
      _
    // Predicated region
    $region14: #{tpu_custom_call.1} parent=1 // pred_check
      _
    $region15: #{tpu_custom_call.1} parent=1 // pred_check_branch
      %18 = sbr.rel (0) target = $region17
    $region16: #{tpu_custom_call.1} parent=1 // pred_region
      _
    $region17: #{tpu_custom_call.1} parent=1 // pred_fallthru
      _
    // Predicated region
    $region18: #{tpu_custom_call.1} parent=1 // pred_check
      _
    $region19: #{tpu_custom_call.1} parent=1 // pred_check_branch
      %20 = sbr.rel (0) target = $region21
    $region20: #{tpu_custom_call.1} parent=1 // pred_region
      _
    $region21: #{tpu_custom_call.1} parent=1 // pred_fallthru
      _
    %v21 = vld [vmem:[%s0] sm:$0xff]
    %v22 = vld [vmem:[%s0 + $0x8] sm:$0xff]
    %v23 = vld [vmem:[%s1] sm:$0xff]
    %v24 = vld [vmem:[%s1 + $0x8] sm:$0xff]
    %v25 = vld [vmem:[%s1 + $0x10] sm:$0xff]
    %v26 = vld [vmem:[%s1 + $0x18] sm:$0xff]
    %v27 = vld [vmem:[%s1 + $0x20] sm:$0xff]
    %v28 = vld [vmem:[%s1 + $0x28] sm:$0xff]
    %v29 = vld [vmem:[%s1 + $0x30] sm:$0xff]
    %v30 = vld [vmem:[%s1 + $0x38] sm:$0xff]
    %v31 = vld [vmem:[%s1 + $0x40] sm:$0xff]
    %v32 = vld [vmem:[%s1 + $0x48] sm:$0xff]
    %v33 = vld [vmem:[%s1 + $0x50] sm:$0xff]
    %v34 = vld [vmem:[%s1 + $0x58] sm:$0xff]
    %v35 = vld [vmem:[%s1 + $0x60] sm:$0xff]
    %v36 = vld [vmem:[%s1 + $0x68] sm:$0xff]
    %v37 = vld [vmem:[%s1 + $0x70] sm:$0xff]
    %v38 = vld [vmem:[%s1 + $0x78] sm:$0xff]
    %v39 = vld [vmem:[%s2] sm:$0x1]
    %v41 = vperm.slane %v39, 0
    %vm43 = vcmask 261120
    %v45 = vsel %vm43, %v21, 0
    %v48 = vsel %vm43, %v22, 0
    %v51 = vsel %vm43, %v23, 0
    %v54 = vsel %vm43, %v24, 0
    %v57 = vsel %vm43, %v25, 0
    %v60 = vsel %vm43, %v26, 0
    %v63 = vsel %vm43, %v27, 0
    %v66 = vsel %vm43, %v28, 0
    %v69 = vsel %vm43, %v29, 0
    %v72 = vsel %vm43, %v30, 0
    %v75 = vsel %vm43, %v31, 0
    %v78 = vsel %vm43, %v32, 0
    %v81 = vsel %vm43, %v33, 0
    %v84 = vsel %vm43, %v34, 0
    %v87 = vsel %vm43, %v35, 0
    %v90 = vsel %vm43, %v36, 0
    %v93 = vsel %vm43, %v37, 0
    %v96 = vsel %vm43, %v38, 0
    %98 = vmatpush.xpose.msra.mxu0 %v96
    %99 = vmatpush.xpose.msra.mxu0 %v93
    %100 = vmatpush.xpose.msra.mxu0 %v90
    %101 = vmatpush.xpose.msra.mxu0 %v87
    %102 = vmatpush.xpose.msra.mxu0 %v84
    %103 = vmatpush.xpose.msra.mxu0 %v81
    %104 = vmatpush.xpose.msra.mxu0 %v78
    %105 = vmatpush.xpose.msra.mxu0 %v75
    %106 = vmatpush.xpose.msra.mxu0 %v72
    %107 = vmatpush.xpose.msra.mxu0 %v69
    %108 = vmatpush.xpose.msra.mxu0 %v66
    %109 = vmatpush.xpose.msra.mxu0 %v63
    %110 = vmatpush.xpose.msra.mxu0 %v60
    %111 = vmatpush.xpose.msra.mxu0 %v57
    %112 = vmatpush.xpose.msra.mxu0 %v54
    %113 = vmatpush.xpose.msra.mxu0 %v51
    %114 = vmatmul.f32.gmra.mxu0 %v45
    %v115 = vpop.f32.mrf.mxu0
    %v116 = vadd.f32 %v41, %v115
    %117 = vmatmul.f32.gmra.mxu0 %v48
    %v118 = vpop.f32.mrf.mxu0
    %v119 = vadd.f32 %v41, %v118
    %120 = vdwg.mxu0
    %v121 = vmul.f32 %v116, 0.5
    %v122 = vmul.f32 %v119, 0.5
    %v123 = vmul.f32 %v116, 0.70710677
    %v124 = vmul.f32 %v119, 0.70710677
    %v125 = vmul.f32 %v123, %v123
    %v126 = vmin.f32 16.0, %v125
    %v127 = vmul.f32 %v126, 2.1237322e-06
    %v128 = vadd.f32 %v127, 0.00028619796
    %v129 = vmul.f32 %v126, %v128
    %v130 = vadd.f32 %v129, 0.0036580483
    %v131 = vmul.f32 %v126, %v130
    %v132 = vadd.f32 %v131, 0.05243302
    %v133 = vmul.f32 %v126, %v132
    %v134 = vadd.f32 %v133, 0.18741608
    %v135 = vmul.f32 %v126, %v134
    %v136 = vadd.f32 %v135, 1.1283791
    %v137 = vmul.f32 %v123, %v136
    %v138 = vmul.f32 %v126, 3.8918573e-05
    %v139 = vadd.f32 %v138, 0.001143296
    %v140 = vmul.f32 %v126, %v139
    %v141 = vadd.f32 %v140, 0.014752088
    %v142 = vmul.f32 %v126, %v141
    %v143 = vadd.f32 %v142, 0.112945676
    %v144 = vmul.f32 %v126, %v143
    %v145 = vadd.f32 %v144, 0.4994258
    %v146 = vmul.f32 %v126, %v145
    %v147 = vadd.f32 %v146, 1.0
    %v148 = vrcp.pop %v147
    %v149 = vmul.f32 %v147, %v148
    %v150 = vsub.f32 1.0, %v149
    %v151 = vmul.f32 %v148, %v150
    %v152 = vadd.f32 %v148, %v151
    %vm153 = vweird.f32 %v147
    %vm154 = vweird.f32 %v148
    %vm155 = vmor %vm153, %vm154
    %v156 = vsel %vm155, %v148, %v152
    %v157 = vand.u32 2147483647, %v147
    %vm158 = vcmp.eq.f32.partialorder %v157, 8.507059e+37
    %v159 = vand.u32 %v147, 2147483648
    %v160 = vor.u32 1.1754944e-38, %v159
    %v161 = vsel %vm158, %v160, %v156
    %v162 = vmul.f32 %v137, %v161
    %v163 = vmin.f32 %v162, 1.0
    %v164 = vmax.f32 %v163, -1.0
    %v165 = vmul.f32 %v124, %v124
    %v166 = vmin.f32 16.0, %v165
    %v167 = vmul.f32 %v166, 2.1237322e-06
    %v168 = vadd.f32 %v167, 0.00028619796
    %v169 = vmul.f32 %v166, %v168
    %v170 = vadd.f32 %v169, 0.0036580483
    %v171 = vmul.f32 %v166, %v170
    %v172 = vadd.f32 %v171, 0.05243302
    %v173 = vmul.f32 %v166, %v172
    %v174 = vadd.f32 %v173, 0.18741608
    %v175 = vmul.f32 %v166, %v174
    %v176 = vadd.f32 %v175, 1.1283791
    %v177 = vmul.f32 %v124, %v176
    %v178 = vmul.f32 %v166, 3.8918573e-05
    %v179 = vadd.f32 %v178, 0.001143296
    %v180 = vmul.f32 %v166, %v179
    %v181 = vadd.f32 %v180, 0.014752088
    %v182 = vmul.f32 %v166, %v181
    %v183 = vadd.f32 %v182, 0.112945676
    %v184 = vmul.f32 %v166, %v183
    %v185 = vadd.f32 %v184, 0.4994258
    %v186 = vmul.f32 %v166, %v185
    %v187 = vadd.f32 %v186, 1.0
    %v188 = vrcp.pop %v187
    %v189 = vmul.f32 %v187, %v188
    %v190 = vsub.f32 1.0, %v189
    %v191 = vmul.f32 %v188, %v190
    %v192 = vadd.f32 %v188, %v191
    %vm193 = vweird.f32 %v187
    %vm194 = vweird.f32 %v188
    %vm195 = vmor %vm193, %vm194
    %v196 = vsel %vm195, %v188, %v192
    %v197 = vand.u32 2147483647, %v187
    %vm198 = vcmp.eq.f32.partialorder %v197, 8.507059e+37
    %v199 = vand.u32 %v187, 2147483648
    %v200 = vor.u32 1.1754944e-38, %v199
    %v201 = vsel %vm198, %v200, %v196
    %v202 = vmul.f32 %v177, %v201
    %v203 = vmin.f32 %v202, 1.0
    %v204 = vmax.f32 %v203, -1.0
    %v205 = vadd.f32 %v164, 1.0
    %v206 = vadd.f32 %v204, 1.0
    %v207 = vmul.f32 %v121, %v205
    %v208 = vmul.f32 %v122, %v206
    %v209 = vld [vmem:[%s3] sm:$0xff]
    %v210 = vld [vmem:[%s3 + $0x8] sm:$0xff]
    %v211 = vld [vmem:[%s3 + $0x10] sm:$0xff]
    %v212 = vld [vmem:[%s3 + $0x18] sm:$0xff]
    %v213 = vld [vmem:[%s4] sm:$0x1]
    %v215 = vperm.slane %v213, 0
    %217 = vmatpush.xpose.msra.mxu0 0.0
    %218 = vmatpush.xpose.msra.mxu0 0.0
    %219 = vmatpush.xpose.msra.mxu0 0.0
    %220 = vmatpush.xpose.msra.mxu0 0.0
    %221 = vmatpush.xpose.msra.mxu0 0.0
    %222 = vmatpush.xpose.msra.mxu0 0.0
    %223 = vmatpush.xpose.msra.mxu0 0.0
    %224 = vmatpush.xpose.msra.mxu0 0.0
    %225 = vmatpush.xpose.msra.mxu0 0.0
    %226 = vmatpush.xpose.msra.mxu0 0.0
    %227 = vmatpush.xpose.msra.mxu0 0.0
    %228 = vmatpush.xpose.msra.mxu0 0.0
    %229 = vmatpush.xpose.msra.mxu0 %v212
    %230 = vmatpush.xpose.msra.mxu0 %v211
    %231 = vmatpush.xpose.msra.mxu0 %v210
    %232 = vmatpush.xpose.msra.mxu0 %v209
    %233 = vmatmul.f32.gmra.mxu0 %v207
    %v234 = vpop.f32.mrf.mxu0
    %v235 = vadd.f32 %v215, %v234
    %236 = vmatmul.f32.gmra.mxu0 %v208
    %v237 = vpop.f32.mrf.mxu0
    %v238 = vadd.f32 %v215, %v237
    %239 = vdwg.mxu0
    %240 = vst.msk [vmem:[#allocation2] sm:$0xff] %vm43, %v235
    %241 = vst.msk [vmem:[#allocation2 + $0x8] sm:$0xff] %vm43, %v238
    // Predicated region
    $region22: #{tpu_custom_call.1} parent=1 // pred_check
      _
    $region23: #{tpu_custom_call.1} parent=1 // pred_check_branch
      %243 = sbr.rel (0) target = $region25
    $region24: #{tpu_custom_call.1} parent=1 // pred_region
      %245 = vsyncadd [#allocation3], 0
      %s246 = sshll.u32 [#allocation2], 4
      %s247 = int_to_ptr.vmem [resolvable:$true] %s246
      %s248 = sshll.u32 %s5, 4
      %s249 = int_to_ptr.hbm [resolvable:$true] %s248
      %254 = dma.vmem_to_hbm [thread:$0]  %s247, 256, %s249, [#allocation3], 128, 128, 8
    $region25: #{tpu_custom_call.1} parent=1 // pred_fallthru
      _
    // Predicated region
    $region26: #{tpu_custom_call.1} parent=1 // pred_check
      _
    $region27: #{tpu_custom_call.1} parent=1 // pred_check_branch
      %256 = sbr.rel (0) target = $region29
    $region28: #{tpu_custom_call.1} parent=1 // pred_region
      %258 = dma.done [#allocation3], 256
    $region29: #{tpu_custom_call.1} parent=1 // pred_fallthru
      _
    %259 = vsyncpa [#allocation3], 1

</llo_original>
